<compile_context>
chip_gen: v6e
topology: v6e:2x2x1
jax: 0.10.0
libtpu: 0.0.40
codegen_flags: <defaults>
</compile_context>

<pallas_src>
import functools

import numpy as np

import jax
import jax.numpy as jnp
from jax.experimental import pallas as pl
from jax.experimental.pallas import tpu as pltpu


# --------------------------------------------------------------------------
# Kernel 1: fused box bounds + per-column scalars.
#   Grid: (column tiles [parallel], row tiles [arbitrary reduction]).
#   x_ref : (trm, tn) row tile of all terms for a column tile
#   Outputs (written on the last row tile, all (1, tn)):
#     l, u              box bounds
#     scale             0 / lambda / 1 per column
#     val               DeepZ offset (0 for non-crossing columns)
#     cross (int32)     1 if the column crosses zero, else 0
#   Scratch: rad_acc, ctr_acc (1, tn) f32 accumulators.
# --------------------------------------------------------------------------
def _bounds_kernel(x_ref, l_ref, u_ref, scale_ref, val_ref, cross_ref,
                   rad_acc, ctr_acc, *, t_rows):
    ri = pl.program_id(1)                       # row-tile index (inner axis)
    trm, tn = x_ref.shape
    row0 = ri * trm

    x = x_ref[...]                              # (trm, tn) f32

    @pl.when(ri == 0)
    def _():
        rad_acc[...] = jnp.zeros_like(rad_acc)
        ctr_acc[...] = x[0:1, :]                # center row lives in row-tile 0

    rows = jax.lax.broadcasted_iota(jnp.int32, (trm, tn), 0) + row0
    # Generator rows only (row > 0) and in-bounds (row < T): masking the center
    # out of the abs-sum avoids sum(|x|) - |center| cancellation and also masks
    # the stale region of a partial edge block.
    gen = jnp.logical_and(rows > 0, rows < t_rows)
    rad_acc[...] += jnp.sum(jnp.where(gen, jnp.abs(x), jnp.float32(0.0)),
                            axis=0, keepdims=True)

    @pl.when(ri == pl.num_programs(1) - 1)
    def _():
        c = ctr_acc[...]
        r = rad_acc[...]
        l = c - r
        u = c + r
        crossing = jnp.logical_and(l < 0.0, u > 0.0)
        den = jnp.where(crossing, u - l, jnp.float32(1.0))
        slope = u / den
        # TODO(synk): PyTorch initializes lambdas with randn/rand noise on the
        # first forward; a deterministic clamp(slope + 0.1, 0, 1) is used here
        # for crossing dims (non-crossing lambdas never affect the result).
        lam = jnp.where(crossing, jnp.clip(slope + 0.1, 0.0, 1.0),
                        jnp.float32(0.5))
        val = jnp.where(lam >= slope, -l * lam * 0.5, u * (1.0 - lam) * 0.5)
        val = jnp.where(crossing, val, jnp.float32(0.0))
        scale = jnp.where(u <= 0.0, jnp.float32(0.0),
                          jnp.where(l < 0.0, lam, jnp.float32(1.0)))
        l_ref[...] = l
        u_ref[...] = u
        scale_ref[...] = scale
        val_ref[...] = val
        cross_ref[...] = crossing.astype(jnp.int32)


# --------------------------------------------------------------------------
# Kernel 2: zonotope ReLU transform.
#   out[r, i] = scale[i] * x[r, i] (0 for r >= T)
#               + val[i]   if (r == 0) or (r == new_row_idx[i])   else 0
#   Steady-state row tiles (0 < row0 and row0 + tm <= T) need only x * scale.
# --------------------------------------------------------------------------
def _zono_relu_kernel(x_ref, scale_ref, val_ref, ridx_ref, o_ref, *, t_rows):
    tm, tn = o_ref.shape
    row0 = pl.program_id(1) * tm                # global row of this output tile
    x = x_ref[...]                              # (tm, tn) f32
    scale = scale_ref[...]                      # (1, tn)  f32

    is_simple = jnp.logical_and(row0 > 0, row0 + tm <= t_rows)

    @pl.when(is_simple)
    def _():                                    # bulk tiles: 1 op/element
        o_ref[...] = x * scale

    @pl.when(jnp.logical_not(is_simple))
    def _():                                    # row 0 / boundary / new-error rows
        rows = jax.lax.broadcasted_iota(jnp.int32, (tm, tn), 0) + row0
        xm = jnp.where(rows < t_rows, x, jnp.float32(0.0))
        add = jnp.logical_or(rows == 0, rows == ridx_ref[...])
        o_ref[...] = xm * scale + jnp.where(add, val_ref[...], jnp.float32(0.0))


# --------------------------------------------------------------------------
# Wrapper: ReLU2D.forward
# --------------------------------------------------------------------------
def zonotope_relu_2d(x, lambdas=None):
    """x: (T, C, n, n) zonotope terms.  Returns (T + new_errors, C, n, n)."""
    T, C, n, n2 = x.shape
    assert n == n2, "expected square spatial dims"
    D = C * n * n
    x_flat = x.reshape(T, D).astype(jnp.float32)

    # ---- column tile: full D or a lane-dense multiple of 128 --------------
    tn = D if D <= 2048 else 2048

    # ---- fused bounds + per-column scalars (Pallas) ------------------------
    # x block is double-buffered: keep 2 * trm * tn * 4 B around 8 MiB so it
    # stays well inside v5e's 16 MiB / v7x's 32 MiB default scoped VMEM.
    max_trm = max(8, ((4 * 1024 * 1024) // (tn * 4)) // 8 * 8)
    trm = T if T <= max_trm else max_trm

    col_spec = pl.BlockSpec((1, tn), lambda j, i: (0, j))
    per_col_f32 = jax.ShapeDtypeStruct((1, D), jnp.float32)

    l, u, scale_k, val_k, cross_k = pl.pallas_call(
        functools.partial(_bounds_kernel, t_rows=T),
        out_shape=(per_col_f32, per_col_f32, per_col_f32, per_col_f32,
                   jax.ShapeDtypeStruct((1, D), jnp.int32)),
        grid=(pl.cdiv(D, tn), pl.cdiv(T, trm)),     # columns outer, rows inner
        in_specs=[pl.BlockSpec((trm, tn), lambda j, i: (i, j))],
        out_specs=(col_spec,) * 5,
        scratch_shapes=[pltpu.VMEM((1, tn), jnp.float32),
                        pltpu.VMEM((1, tn), jnp.float32)],
        compiler_params=pltpu.CompilerParams(
            dimension_semantics=("parallel", "arbitrary")),
    )(x_flat)

    crossing = cross_k[0] > 0
    if lambdas is None:
        scale_2d, val_2d = scale_k, val_k           # fused defaults from kernel
    else:
        lam = lambdas.reshape(D).astype(jnp.float32)
        l1, u1 = l[0], u[0]
        den = jnp.where(crossing, u1 - l1, jnp.float32(1.0))
        slope = u1 / den
        val = jnp.where(lam >= slope, -l1 * lam * 0.5, u1 * (1.0 - lam) * 0.5)
        val = jnp.where(crossing, val, jnp.float32(0.0))
        scale = jnp.where(u1 <= 0, jnp.float32(0.0),
                          jnp.where(l1 < 0, lam, jnp.float32(1.0)))
        scale_2d, val_2d = scale.reshape(1, D), val.reshape(1, D)

    cross_i32 = cross_k[0]
    excl = jnp.cumsum(cross_i32) - cross_i32                 # exclusive prefix
    new_row_idx = jnp.where(crossing, T + excl, -1).astype(jnp.int32)
    new_row_idx = new_row_idx.reshape(1, D)

    # TODO(synk): the output row count is data dependent (one new error row per
    # crossing dimension), so this host sync is unavoidable and the wrapper is
    # not end-to-end jittable.
    new_errors = int(jnp.sum(cross_i32))
    T_out = T + new_errors

    # ---- main transform (Pallas, 2-D parallel grid; no x_pad concat) -------
    max_tm = max(8, min(512, ((2 * 1024 * 1024) // (tn * 4)) // 8 * 8))
    if T >= 8:
        # Optimized path: read the original x; tm is a multiple of 8 so the
        # same block shape is legal for both the (T, D) input and the
        # (T_out, D) output; new-error rows are synthesized in-kernel.
        x_main = x_flat
        tm = min(max_tm, (T // 8) * 8)
    else:
        # Degenerate tiny-T fallback: zero-pad the error rows (cheap here).
        x_main = jnp.concatenate(
            [x_flat, jnp.zeros((T_out - T, D), jnp.float32)], axis=0)
        tm = T_out if T_out <= max_tm else max_tm

    x_rows = x_main.shape[0]
    x_max_blk = max(0, (x_rows + tm - 1) // tm - 1)          # clamp target

    grid = (pl.cdiv(D, tn), pl.cdiv(T_out, tm))              # cols outer, rows inner

    out = pl.pallas_call(
        functools.partial(_zono_relu_kernel, t_rows=T),
        out_shape=jax.ShapeDtypeStruct((T_out, D), jnp.float32),
        grid=grid,
        in_specs=[
            # x row-block index is clamped for output tiles past T; the kernel
            # masks those rows, so no zero padding is ever read from HBM.
            pl.BlockSpec((tm, tn), lambda j, i: (jnp.minimum(i, x_max_blk), j)),
            pl.BlockSpec((1, tn), lambda j, i: (0, j)),
            pl.BlockSpec((1, tn), lambda j, i: (0, j)),
            pl.BlockSpec((1, tn), lambda j, i: (0, j)),
        ],
        out_specs=pl.BlockSpec((tm, tn), lambda j, i: (i, j)),
        compiler_params=pltpu.CompilerParams(
            dimension_semantics=("parallel", "parallel")),
    )(x_main, scale_2d, val_2d, new_row_idx)

    return out.reshape(T_out, C, n, n)


# --------------------------------------------------------------------------
# Pure NumPy reference mirroring the PyTorch loop (box / relu / ReLU / ReLU2D)
# --------------------------------------------------------------------------
def _reference(x, lambdas):
    x = np.asarray(x, dtype=np.float32)
    lambdas = np.asarray(lambdas, dtype=np.float32)
    T, C, n, _ = x.shape
    D = C * n * n
    xt = x.reshape(T, D).T                                   # (D, T)

    boxes = []
    for i in range(D):
        r = np.sum(np.abs(xt[i, 1:]))
        boxes.append((xt[i, 0] - r, xt[i, 0] + r))
    new_errors = sum(int(lo < 0 < hi) for lo, hi in boxes)

    eps_id = T
    xt = np.concatenate([xt, np.zeros((D, new_errors), np.float32)], axis=1)
    rows = []
    for i in range(D):
        lo, hi = boxes[i]
        lam = float(lambdas[i])
        xi = xt[i].copy()
        if hi <= 0:
            xi = np.zeros_like(xi)
        elif lo < 0:
            xi = xi * lam
            if lam >= hi / (hi - lo):
                v = -lo * lam / 2
            else:
                v = hi * (1 - lam) / 2
            xi[eps_id] += v
            xi[0] += v
            eps_id += 1
        rows.append(xi)
    out = np.stack(rows).T                                   # (T + new_errors, D)
    return out.reshape(out.shape[0], C, n, n)


if __name__ == "__main__":
    # Small zonotope input consistent with ReLU2D: (T terms, C, n, n).
    T, C, n = 41, 1, 16                                      # D = 256 (lane-dense)
    key = jax.random.PRNGKey(0)
    k_c, k_g = jax.random.split(key)
    center = jax.random.uniform(k_c, (1, C, n, n), jnp.float32,
                                minval=-1.0, maxval=1.0)
    gens = 0.01 * jax.random.normal(k_g, (T - 1, C, n, n), jnp.float32)
    x = jnp.concatenate([center, gens], axis=0)              # mixes all 3 ReLU cases

    out = zonotope_relu_2d(x)
    out = jax.block_until_ready(out)

    # Recompute the deterministic lambdas exactly as the kernel does, for the
    # reference comparison.
    x_flat = np.asarray(x, np.float32).reshape(T, C * n * n)
    rad = np.sum(np.abs(x_flat[1:]), axis=0)
    lo, hi = x_flat[0] - rad, x_flat[0] + rad
    crossing = (lo < 0) & (hi > 0)
    lam = np.where(crossing,
                   np.clip(hi / np.where(crossing, hi - lo, 1.0) + 0.1, 0.0, 1.0),
                   0.5).astype(np.float32)

    ref = _reference(x, lam)
    assert out.shape == ref.shape, (out.shape, ref.shape)
    np.testing.assert_allclose(np.asarray(out), ref, rtol=1e-5, atol=1e-5)

    print("KERNEL_OK")
</pallas_src>

<mosaic_0001>
module attributes {stable_mosaic.version = 11 : i64} {
  func.func @_bounds_kernel(%arg0: i32, %arg1: i32, %arg2: memref<41x256xf32, #tpu.memory_space<vmem>>, %arg3: memref<1x256xf32, #tpu.memory_space<vmem>>, %arg4: memref<1x256xf32, #tpu.memory_space<vmem>>, %arg5: memref<1x256xf32, #tpu.memory_space<vmem>>, %arg6: memref<1x256xf32, #tpu.memory_space<vmem>>, %arg7: memref<1x256xi32, #tpu.memory_space<vmem>>, %arg8: memref<1x256xf32, #tpu.memory_space<vmem>>, %arg9: memref<1x256xf32, #tpu.memory_space<vmem>>) attributes {dimension_semantics = [#tpu.dimension_semantics<parallel>, #tpu.dimension_semantics<arbitrary>], iteration_bounds = array<i64: 1, 1>, scalar_prefetch = 0 : i64, scratch_operands = 2 : i64, tpu.core_type = #tpu.core_type<tc>, window_params = [{transform_indices = @transform_0, window_bounds = array<i64: 41, 256>}, {transform_indices = @transform_1, window_bounds = array<i64: 1, 256>}, {transform_indices = @transform_2, window_bounds = array<i64: 1, 256>}, {transform_indices = @transform_3, window_bounds = array<i64: 1, 256>}, {transform_indices = @transform_4, window_bounds = array<i64: 1, 256>}, {transform_indices = @transform_5, window_bounds = array<i64: 1, 256>}]} {
    %c41_i32 = arith.constant 41 : i32
    %0 = arith.muli %arg1, %c41_i32 : i32
    %c0 = arith.constant 0 : index
    %c0_0 = arith.constant 0 : index
    %1 = vector.load %arg2[%c0, %c0_0] : memref<41x256xf32, #tpu.memory_space<vmem>>, vector<41x256xf32>
    %c0_i32 = arith.constant 0 : i32
    %2 = arith.cmpi eq, %arg1, %c0_i32 : i32
    %3 = arith.extui %2 : i1 to i32
    %c0_i32_1 = arith.constant 0 : i32
    %4 = arith.cmpi ne, %3, %c0_i32_1 : i32
    scf.if %4 {
      %cst_11 = arith.constant 0.000000e+00 : f32
      %24 = vector.broadcast %cst_11 : f32 to vector<1x256xf32>
      %c0_12 = arith.constant 0 : index
      %c0_13 = arith.constant 0 : index
      %25 = vector.load %arg8[%c0_12, %c0_13] : memref<1x256xf32, #tpu.memory_space<vmem>>, vector<1x256xf32>
      tpu.vector_store %arg8[%c0_12, %c0_13], %24 {strides = array<i32>} : memref<1x256xf32, #tpu.memory_space<vmem>>, vector<1x256xf32>,
      %26 = vector.extract_strided_slice %1 {offsets = [0, 0], sizes = [1, 256], strides = [1, 1]} : vector<41x256xf32> to vector<1x256xf32>
      %c0_14 = arith.constant 0 : index
      %c0_15 = arith.constant 0 : index
      %27 = vector.load %arg9[%c0_14, %c0_15] : memref<1x256xf32, #tpu.memory_space<vmem>>, vector<1x256xf32>
      tpu.vector_store %arg9[%c0_14, %c0_15], %26 {strides = array<i32>} : memref<1x256xf32, #tpu.memory_space<vmem>>, vector<1x256xf32>,
    } else {
    }
    %5 = tpu.iota {dimensions = array<i32: 0>} : vector<41x256xi32>
    %6 = vector.broadcast %0 : i32 to vector<41x256xi32>
    %7 = arith.addi %5, %6 : vector<41x256xi32>
    %c0_i32_2 = arith.constant 0 : i32
    %8 = vector.broadcast %c0_i32_2 : i32 to vector<41x256xi32>
    %9 = arith.cmpi sgt, %7, %8 : vector<41x256xi32>
    %c41_i32_3 = arith.constant 41 : i32
    %10 = vector.broadcast %c41_i32_3 : i32 to vector<41x256xi32>
    %11 = arith.cmpi slt, %7, %10 : vector<41x256xi32>
    %12 = arith.andi %9, %11 : vector<41x256xi1>
    %c0_4 = arith.constant 0 : index
    %c0_5 = arith.constant 0 : index
    %13 = vector.load %arg8[%c0_4, %c0_5] : memref<1x256xf32, #tpu.memory_space<vmem>>, vector<1x256xf32>
    %14 = math.absf %1 : vector<41x256xf32>
    %cst = arith.constant 0.000000e+00 : f32
    %15 = vector.broadcast %cst : f32 to vector<41x256xf32>
    %16 = arith.select %12, %14, %15 : vector<41x256xi1>, vector<41x256xf32>
    %cst_6 = arith.constant dense<0.000000e+00> : vector<256xf32>
    %17 = vector.multi_reduction <add>, %16, %cst_6 [0] : vector<41x256xf32> to vector<256xf32>
    %18 = vector.shape_cast %17 : vector<256xf32> to vector<1x256xf32>
    %19 = arith.addf %13, %18 : vector<1x256xf32>
    %c0_7 = arith.constant 0 : index
    %c0_8 = arith.constant 0 : index
    %20 = vector.load %arg8[%c0_7, %c0_8] : memref<1x256xf32, #tpu.memory_space<vmem>>, vector<1x256xf32>
    tpu.vector_store %arg8[%c0_7, %c0_8], %19 {strides = array<i32>} : memref<1x256xf32, #tpu.memory_space<vmem>>, vector<1x256xf32>,
    %c0_i32_9 = arith.constant 0 : i32
    %21 = arith.cmpi eq, %arg1, %c0_i32_9 : i32
    %22 = arith.extui %21 : i1 to i32
    %c0_i32_10 = arith.constant 0 : i32
    %23 = arith.cmpi ne, %22, %c0_i32_10 : i32
    scf.if %23 {
      %c0_11 = arith.constant 0 : index
      %c0_12 = arith.constant 0 : index
      %24 = vector.load %arg9[%c0_11, %c0_12] : memref<1x256xf32, #tpu.memory_space<vmem>>, vector<1x256xf32>
      %c0_13 = arith.constant 0 : index
      %c0_14 = arith.constant 0 : index
      %25 = vector.load %arg8[%c0_13, %c0_14] : memref<1x256xf32, #tpu.memory_space<vmem>>, vector<1x256xf32>
      %26 = arith.subf %24, %25 : vector<1x256xf32>
      %27 = arith.addf %24, %25 : vector<1x256xf32>
      %cst_15 = arith.constant 0.000000e+00 : f32
      %28 = vector.broadcast %cst_15 : f32 to vector<1x256xf32>
      %29 = arith.cmpf olt, %26, %28 : vector<1x256xf32>
      %cst_16 = arith.constant 0.000000e+00 : f32
      %30 = vector.broadcast %cst_16 : f32 to vector<1x256xf32>
      %31 = arith.cmpf ogt, %27, %30 : vector<1x256xf32>
      %32 = arith.andi %29, %31 : vector<1x256xi1>
      %33 = arith.subf %27, %26 : vector<1x256xf32>
      %cst_17 = arith.constant 1.000000e+00 : f32
      %34 = vector.broadcast %cst_17 : f32 to vector<1x256xf32>
      %35 = arith.select %32, %33, %34 : vector<1x256xi1>, vector<1x256xf32>
      %36 = arith.divf %27, %35 : vector<1x256xf32>
      %cst_18 = arith.constant 1.000000e-01 : f32
      %37 = vector.broadcast %cst_18 : f32 to vector<1x256xf32>
      %38 = arith.addf %36, %37 : vector<1x256xf32>
      %cst_19 = arith.constant 0.000000e+00 : f32
      %cst_20 = arith.constant 1.000000e+00 : f32
      %39 = vector.broadcast %cst_19 : f32 to vector<1x256xf32>
      %40 = arith.maximumf %39, %38 : vector<1x256xf32>
      %41 = vector.broadcast %cst_20 : f32 to vector<1x256xf32>
      %42 = arith.minimumf %41, %40 : vector<1x256xf32>
      %cst_21 = arith.constant 5.000000e-01 : f32
      %43 = vector.broadcast %cst_21 : f32 to vector<1x256xf32>
      %44 = arith.select %32, %42, %43 : vector<1x256xi1>, vector<1x256xf32>
      %45 = arith.cmpf oge, %44, %36 : vector<1x256xf32>
      %cst_22 = arith.constant 0.000000e+00 : f32
      %46 = vector.broadcast %cst_22 : f32 to vector<1x256xf32>
      %47 = arith.subf %46, %26 : vector<1x256xf32>
      %48 = arith.mulf %47, %44 : vector<1x256xf32>
      %cst_23 = arith.constant 5.000000e-01 : f32
      %49 = vector.broadcast %cst_23 : f32 to vector<1x256xf32>
      %50 = arith.mulf %48, %49 : vector<1x256xf32>
      %cst_24 = arith.constant 1.000000e+00 : f32
      %51 = vector.broadcast %cst_24 : f32 to vector<1x256xf32>
      %52 = arith.subf %51, %44 : vector<1x256xf32>
      %53 = arith.mulf %27, %52 : vector<1x256xf32>
      %cst_25 = arith.constant 5.000000e-01 : f32
      %54 = vector.broadcast %cst_25 : f32 to vector<1x256xf32>
      %55 = arith.mulf %53, %54 : vector<1x256xf32>
      %56 = arith.select %45, %50, %55 : vector<1x256xi1>, vector<1x256xf32>
      %cst_26 = arith.constant 0.000000e+00 : f32
      %57 = vector.broadcast %cst_26 : f32 to vector<1x256xf32>
      %58 = arith.select %32, %56, %57 : vector<1x256xi1>, vector<1x256xf32>
      %cst_27 = arith.constant 0.000000e+00 : f32
      %59 = vector.broadcast %cst_27 : f32 to vector<1x256xf32>
      %60 = arith.cmpf ole, %27, %59 : vector<1x256xf32>
      %cst_28 = arith.constant 0.000000e+00 : f32
      %61 = vector.broadcast %cst_28 : f32 to vector<1x256xf32>
      %62 = arith.cmpf olt, %26, %61 : vector<1x256xf32>
      %cst_29 = arith.constant 1.000000e+00 : f32
      %63 = vector.broadcast %cst_29 : f32 to vector<1x256xf32>
      %64 = arith.select %62, %44, %63 : vector<1x256xi1>, vector<1x256xf32>
      %cst_30 = arith.constant 0.000000e+00 : f32
      %65 = vector.broadcast %cst_30 : f32 to vector<1x256xf32>
      %66 = arith.select %60, %65, %64 : vector<1x256xi1>, vector<1x256xf32>
      %c0_31 = arith.constant 0 : index
      %c0_32 = arith.constant 0 : index
      %67 = vector.load %arg3[%c0_31, %c0_32] : memref<1x256xf32, #tpu.memory_space<vmem>>, vector<1x256xf32>
      tpu.vector_store %arg3[%c0_31, %c0_32], %26 {strides = array<i32>} : memref<1x256xf32, #tpu.memory_space<vmem>>, vector<1x256xf32>,
      %c0_33 = arith.constant 0 : index
      %c0_34 = arith.constant 0 : index
      %68 = vector.load %arg4[%c0_33, %c0_34] : memref<1x256xf32, #tpu.memory_space<vmem>>, vector<1x256xf32>
      tpu.vector_store %arg4[%c0_33, %c0_34], %27 {strides = array<i32>} : memref<1x256xf32, #tpu.memory_space<vmem>>, vector<1x256xf32>,
      %c0_35 = arith.constant 0 : index
      %c0_36 = arith.constant 0 : index
      %69 = vector.load %arg5[%c0_35, %c0_36] : memref<1x256xf32, #tpu.memory_space<vmem>>, vector<1x256xf32>
      tpu.vector_store %arg5[%c0_35, %c0_36], %66 {strides = array<i32>} : memref<1x256xf32, #tpu.memory_space<vmem>>, vector<1x256xf32>,
      %c0_37 = arith.constant 0 : index
      %c0_38 = arith.constant 0 : index
      %70 = vector.load %arg6[%c0_37, %c0_38] : memref<1x256xf32, #tpu.memory_space<vmem>>, vector<1x256xf32>
      tpu.vector_store %arg6[%c0_37, %c0_38], %58 {strides = array<i32>} : memref<1x256xf32, #tpu.memory_space<vmem>>, vector<1x256xf32>,
      %71 = arith.extui %32 : vector<1x256xi1> to vector<1x256xi32>
      %c0_39 = arith.constant 0 : index
      %c0_40 = arith.constant 0 : index
      %72 = vector.load %arg7[%c0_39, %c0_40] : memref<1x256xi32, #tpu.memory_space<vmem>>, vector<1x256xi32>
      tpu.vector_store %arg7[%c0_39, %c0_40], %71 {strides = array<i32>} : memref<1x256xi32, #tpu.memory_space<vmem>>, vector<1x256xi32>,
    } else {
    }
    return
  }
  func.func @transform_0(%arg0: i32, %arg1: i32) -> (i32, i32) {
    %c0_i32 = arith.constant 0 : i32
    return %arg1, %arg0 : i32, i32
  }
  func.func @transform_1(%arg0: i32, %arg1: i32) -> (i32, i32) {
    %c0_i32 = arith.constant 0 : i32
    %c0_i32_0 = arith.constant 0 : i32
    return %c0_i32, %arg0 : i32, i32
  }
  func.func @transform_2(%arg0: i32, %arg1: i32) -> (i32, i32) {
    %c0_i32 = arith.constant 0 : i32
    %c0_i32_0 = arith.constant 0 : i32
    return %c0_i32, %arg0 : i32, i32
  }
  func.func @transform_3(%arg0: i32, %arg1: i32) -> (i32, i32) {
    %c0_i32 = arith.constant 0 : i32
    %c0_i32_0 = arith.constant 0 : i32
    return %c0_i32, %arg0 : i32, i32
  }
  func.func @transform_4(%arg0: i32, %arg1: i32) -> (i32, i32) {
    %c0_i32 = arith.constant 0 : i32
    %c0_i32_0 = arith.constant 0 : i32
    return %c0_i32, %arg0 : i32, i32
  }
  func.func @transform_5(%arg0: i32, %arg1: i32) -> (i32, i32) {
    %c0_i32 = arith.constant 0 : i32
    %c0_i32_0 = arith.constant 0 : i32
    return %c0_i32, %arg0 : i32, i32
  }
}

</mosaic_0001>

<llo_original>
// kernel: tpu_custom_call.1
$region0: #{tpu_custom_call.1}
  #allocation0 [shape = 'u32[]', space=smem, size = 0x4, offset = 0x4, fixed_abs, tag = 'smem constant byte address 0x4 - core index']
  #allocation1 [shape = 'u32[144,128]{1,0:T(1,128)}', space=vmem, size = 0x12000, scoped, tag = 'internal scratch']
  #allocation2 [shape = 'f32[1,256]{1,0:T(1,128)}', space=vmem, size = 0x400, scoped, tag = 'scratch operand']
  #allocation3 [shape = 'f32[1,256]{1,0:T(1,128)}', space=vmem, size = 0x400, scoped, tag = 'scratch operand']
  %s0 = inlined_call_operand.hbm [shape: f32[41,256], index: 0, kind: input, shape index: {}]
  %s1 = inlined_call_operand.hbm [shape: f32[1,256], index: 1, kind: output, shape index: {0}]
  %s2 = inlined_call_operand.hbm [shape: f32[1,256], index: 2, kind: output, shape index: {1}]
  %s3 = inlined_call_operand.hbm [shape: f32[1,256], index: 3, kind: output, shape index: {2}]
  %s4 = inlined_call_operand.hbm [shape: f32[1,256], index: 4, kind: output, shape index: {3}]
  %s5 = inlined_call_operand.hbm [shape: s32[1,256], index: 5, kind: output, shape index: {4}]
  %6 = xla_tuple %s1, %s2, %s3, %s4, %s5
  %s7 = sld [smem:[#allocation0]]
  $region58: #{tpu_custom_call.1} parent=0
    _
  %s9 = ssub.s32 1, %s7
  %s10 = scalar_select 0, %s9, %s7
  $region1: #{tpu_custom_call.1} parent=0
    #allocation4 [shape = 'u8[49152]{0}', space=vmem, size = 0xc000, scoped, tag = 'input window, operand 0, single buffered']
    #allocation5 [shape = 's32[1]{0}', space=sflag, size = 0x4, scoped, tag = 'scoped memory for tpu_custom_call.1']
    #allocation6 [shape = 's32[1]{0}', space=sflag, size = 0x4, scoped, tag = 'scoped memory for tpu_custom_call.1']
    #allocation7 [shape = 'u8[1024]{0}', space=vmem, size = 0x400, scoped, tag = 'output window, operand 0, single buffered']
    #allocation8 [shape = 'u8[1024]{0}', space=vmem, size = 0x400, scoped, tag = 'output window, operand 1, single buffered']
    #allocation9 [shape = 's32[1]{0}', space=sflag, size = 0x4, scoped, tag = 'scoped memory for tpu_custom_call.1']
    #allocation10 [shape = 'u8[1024]{0}', space=vmem, size = 0x400, scoped, tag = 'output window, operand 2, single buffered']
    #allocation11 [shape = 'u8[1024]{0}', space=vmem, size = 0x400, scoped, tag = 'output window, operand 3, single buffered']
    #allocation12 [shape = 's32[1]{0}', space=sflag, size = 0x4, scoped, tag = 'scoped memory for tpu_custom_call.1']
    #allocation13 [shape = 'u8[1024]{0}', space=vmem, size = 0x400, scoped, tag = 'output window, operand 4, single buffered']
    %11 = vsyncpa [#allocation5], 0
    %12 = vsyncpa [#allocation6], 0
    %13 = vsyncpa [#allocation9], 0
    %14 = vsyncpa [#allocation12], 0
    // Predicated region
    $region2: #{tpu_custom_call.1} parent=1 // pred_check
      _
    $region3: #{tpu_custom_call.1} parent=1 // pred_check_branch
      %16 = sbr.rel (0) target = $region5
    $region4: #{tpu_custom_call.1} parent=1 // pred_region
      %s18 = ssub.s32 1536, 1536
      %19 = vsyncadd [#allocation5], %s18
      %s20 = sshll.u32 [#allocation4], 4
      %s21 = int_to_ptr.vmem [resolvable:$true] %s20
      %26 = dma.hbm_to_vmem [thread:$0]  %s0, 1536, %s21, [#allocation5], 256, 256, 16
    $region5: #{tpu_custom_call.1} parent=1 // pred_fallthru
      _
    // Predicated region
    $region6: #{tpu_custom_call.1} parent=1 // pred_check
      _
    $region7: #{tpu_custom_call.1} parent=1 // pred_check_branch
      %28 = sbr.rel (0) target = $region9
    $region8: #{tpu_custom_call.1} parent=1 // pred_region
      %29 = dma.done [#allocation5], 1536
    $region9: #{tpu_custom_call.1} parent=1 // pred_fallthru
      _
    %s30 = smul.u32 0, 41
    %v31 = vld [vmem:[#allocation4] sm:$0xff]
    %v32 = vld [vmem:[#allocation4 + $0x8] sm:$0xff]
    %v33 = vld [vmem:[#allocation4 + $0x10] sm:$0xff]
    %v34 = vld [vmem:[#allocation4 + $0x18] sm:$0xff]
    %v35 = vld [vmem:[#allocation4 + $0x20] sm:$0xff]
    %v36 = vld [vmem:[#allocation4 + $0x28] sm:$0xff]
    %v37 = vld [vmem:[#allocation4 + $0x30] sm:$0xff]
    %v38 = vld [vmem:[#allocation4 + $0x38] sm:$0xff]
    %v39 = vld [vmem:[#allocation4 + $0x40] sm:$0xff]
    %v40 = vld [vmem:[#allocation4 + $0x48] sm:$0xff]
    %v41 = vld [vmem:[#allocation4 + $0x50] sm:$0x1]
    %v42 = vld [vmem:[#allocation4 + $0x58] sm:$0x1]
    %p43 = scmp.eq.s32.totalorder 0, 0
    // Predicated region
    $region10: #{tpu_custom_call.1} parent=1 // pred_check
      %p44 = pneg %p43
    $region11: #{tpu_custom_call.1} parent=1 // pred_check_branch
      %46 = sbr.rel (%p44) target = $region13
    $region12: #{tpu_custom_call.1} parent=1 // pred_region
      %v47 = vlaneseq
      %vm48 = vcmp.ge.s32.totalorder %v47, 0
      %vm49 = vcmp.lt.s32.totalorder %v47, 256
      %vm50 = vmand %vm48, %vm49
      %51 = vst.msk [vmem:[#allocation2] sm:$0x3] %vm50, 0.0
      %v54 = vcombine.low %v31, %v32
      %v56 = vunpack.c.l.s4 1966171168
      %v57 = vunpack.c.0.s8 %v56
      %v58 = vlaneseq
      %v59 = vshrl.u32 %v58, 7
      %v60 = vsub.s32 %v57, %v59
      %v61 = vrot.slane %v54, %v60
      %v63 = vunpack.c.l.s4 1966171168
      %v64 = vunpack.c.0.s8 %v63
      %v65 = vlaneseq
      %v66 = vshrl.u32 %v65, 7
      %v67 = vsub.s32 %v64, %v66
      %v68 = vrot.slane %v61, %v67
      %70 = vst.msk [vmem:[#allocation3] sm:$0x3] %vm50, %v68
    $region13: #{tpu_custom_call.1} parent=1 // pred_fallthru
      _
    %v71 = vlaneseq
    %v72 = vshrl.u32 %v71, 7
    %v73 = vadd.s32 %v72, 8
    %v74 = vadd.s32 %v72, 16
    %v75 = vadd.s32 %v72, 24
    %v76 = vadd.s32 %v72, 32
    %v77 = vadd.s32 %v72, 40
    %v78 = vstv %s30
    %v79 = vadd.s32 %v72, %v78
    %v80 = vadd.s32 %v73, %v78
    %v81 = vadd.s32 %v74, %v78
    %v82 = vadd.s32 %v75, %v78
    %v83 = vadd.s32 %v76, %v78
    %v84 = vadd.s32 %v77, %v78
    %vm85 = vcmp.gt.s32.totalorder %v79, 0
    %vm86 = vcmp.gt.s32.totalorder %v80, 0
    %vm87 = vcmp.gt.s32.totalorder %v81, 0
    %vm88 = vcmp.gt.s32.totalorder %v82, 0
    %vm89 = vcmp.gt.s32.totalorder %v83, 0
    %vm90 = vcmp.gt.s32.totalorder %v84, 0
    %vm91 = vcmp.lt.s32.totalorder %v79, 41
    %vm92 = vcmp.lt.s32.totalorder %v80, 41
    %vm93 = vcmp.lt.s32.totalorder %v81, 41
    %vm94 = vcmp.lt.s32.totalorder %v82, 41
    %vm95 = vcmp.lt.s32.totalorder %v83, 41
    %vm96 = vcmp.lt.s32.totalorder %v84, 41
    %vm97 = vmand %vm85, %vm91
    %vm98 = vmand %vm86, %vm92
    %vm99 = vmand %vm87, %vm93
    %vm100 = vmand %vm88, %vm94
    %vm101 = vmand %vm89, %vm95
    %vm102 = vmand %vm90, %vm96
    %v103 = vld [vmem:[#allocation2] sm:$0x3]
    %v104 = vand.u32 2147483647, %v31
    %v105 = vand.u32 2147483647, %v32
    %v106 = vand.u32 2147483647, %v33
    %v107 = vand.u32 2147483647, %v34
    %v108 = vand.u32 2147483647, %v35
    %v109 = vand.u32 2147483647, %v36
    %v110 = vand.u32 2147483647, %v37
    %v111 = vand.u32 2147483647, %v38
    %v112 = vand.u32 2147483647, %v39
    %v113 = vand.u32 2147483647, %v40
    %v114 = vand.u32 2147483647, %v41
    %v115 = vand.u32 2147483647, %v42
    %v116 = vsel %vm97, %v104, 0.0
    %v117 = vsel %vm97, %v105, 0.0
    %v118 = vsel %vm98, %v106, 0.0
    %v119 = vsel %vm98, %v107, 0.0
    %v120 = vsel %vm99, %v108, 0.0
    %v121 = vsel %vm99, %v109, 0.0
    %v122 = vsel %vm100, %v110, 0.0
    %v123 = vsel %vm100, %v111, 0.0
    %v124 = vsel %vm101, %v112, 0.0
    %v125 = vsel %vm101, %v113, 0.0
    %v126 = vsel %vm102, %v114, 0.0
    %v127 = vsel %vm102, %v115, 0.0
    %v128 = vadd.f32 %v116, %v118
    %v129 = vadd.f32 %v128, %v120
    %v130 = vadd.f32 %v129, %v122
    %v131 = vadd.f32 %v130, %v124
    %vm132 = vcmask 1040384
    %v133 = vsel %vm132, %v126, 0.0
    %v134 = vadd.f32 %v131, %v133
    %v135 = vrot.slane %v134, 4
    %v136 = vadd.f32 %v134, %v135
    %v137 = vrot.slane %v136, 2
    %v138 = vadd.f32 %v136, %v137
    %v139 = vrot.slane %v138, 1
    %v140 = vadd.f32 %v138, %v139
    %v141 = vadd.f32 %v117, %v119
    %v142 = vadd.f32 %v141, %v121
    %v143 = vadd.f32 %v142, %v123
    %v144 = vadd.f32 %v143, %v125
    %v145 = vsel %vm132, %v127, 0.0
    %v146 = vadd.f32 %v144, %v145
    %v147 = vrot.slane %v146, 4
    %v148 = vadd.f32 %v146, %v147
    %v149 = vrot.slane %v148, 2
    %v150 = vadd.f32 %v148, %v149
    %v151 = vrot.slane %v150, 1
    %v152 = vadd.f32 %v150, %v151
    %v155 = vcombine.low %v140, %v152
    %v157 = vunpack.c.l.s4 1966171168
    %v158 = vunpack.c.0.s8 %v157
    %v159 = vlaneseq
    %v160 = vshrl.u32 %v159, 7
    %v161 = vsub.s32 %v158, %v160
    %v162 = vrot.slane %v155, %v161
    %v164 = vunpack.c.l.s4 1966171168
    %v165 = vunpack.c.0.s8 %v164
    %v166 = vlaneseq
    %v167 = vshrl.u32 %v166, 7
    %v168 = vsub.s32 %v165, %v167
    %v169 = vrot.slane %v162, %v168
    %v171 = vadd.f32 %v103, %v169
    %v172 = vlaneseq
    %vm173 = vcmp.ge.s32.totalorder %v172, 0
    %vm174 = vcmp.lt.s32.totalorder %v172, 256
    %vm175 = vmand %vm173, %vm174
    %176 = vst.msk [vmem:[#allocation2] sm:$0x3] %vm175, %v171
    // Predicated region
    $region14: #{tpu_custom_call.1} parent=1 // pred_check
      %p177 = pneg %p43
    $region15: #{tpu_custom_call.1} parent=1 // pred_check_branch
      %179 = sbr.rel (%p177) target = $region17
    $region16: #{tpu_custom_call.1} parent=1 // pred_region
      %v180 = vld [vmem:[#allocation3] sm:$0x3]
      %v181 = vld [vmem:[#allocation2] sm:$0x3]
      %v182 = vsub.f32 %v180, %v181
      %v183 = vadd.f32 %v180, %v181
      %vm184 = vcmp.lt.f32.partialorder %v182, 0.0
      %vm185 = vcmp.gt.f32.partialorder %v183, 0.0
      %vm186 = vmand %vm184, %vm185
      %v187 = vsub.f32 %v183, %v182
      %v188 = vsel %vm186, %v187, 1.0
      %v189 = vrcp.pop %v188
      %v190 = vmul.f32 %v183, %v189
      %v191 = vadd.f32 %v190, 0.1
      %v192 = vmax.f32 %v191, 0.0
      %v193 = vmin.f32 %v192, 1.0
      %v194 = vsel %vm186, %v193, 0.5
      %vm195 = vcmp.ge.f32.partialorder %v194, %v190
      %v196 = vsub.f32 0.0, %v182
      %v197 = vmul.f32 %v196, %v194
      %v198 = vmul.f32 %v197, 0.5
      %v199 = vsub.f32 1.0, %v194
      %v200 = vmul.f32 %v183, %v199
      %v201 = vmul.f32 %v200, 0.5
      %v202 = vsel %vm195, %v198, %v201
      %v203 = vsel %vm186, %v202, 0.0
      %vm204 = vcmp.le.f32.partialorder %v183, 0.0
      %v205 = vsel %vm184, %v194, 1.0
      %v206 = vsel %vm204, 0.0, %v205
      %207 = vst.msk [vmem:[#allocation7] sm:$0x3] %vm175, %v182
      %208 = vst.msk [vmem:[#allocation8] sm:$0x3] %vm175, %v183
      %209 = vst.msk [vmem:[#allocation10] sm:$0x3] %vm175, %v206
      %210 = vst.msk [vmem:[#allocation11] sm:$0x3] %vm175, %v203
      %v211 = vsel %vm186, 1, 0
      %212 = vst.msk [vmem:[#allocation13] sm:$0x3] %vm175, %v211
    $region17: #{tpu_custom_call.1} parent=1 // pred_fallthru
      _
    // Predicated region
    $region18: #{tpu_custom_call.1} parent=1 // pred_check
      _
    $region19: #{tpu_custom_call.1} parent=1 // pred_check_branch
      %214 = sbr.rel (0) target = $region21
    $region20: #{tpu_custom_call.1} parent=1 // pred_region
      %s216 = ssub.s32 32, 32
      %217 = vsyncadd [#allocation6], %s216
      %s219 = sshll.u32 [#allocation7], 4
      %s220 = int_to_ptr.vmem [resolvable:$true] %s219
      %222 = dma.vmem_to_hbm [thread:$0]  %s220, 32, %s1, [#allocation6]
    $region21: #{tpu_custom_call.1} parent=1 // pred_fallthru
      _
    // Predicated region
    $region22: #{tpu_custom_call.1} parent=1 // pred_check
      _
    $region23: #{tpu_custom_call.1} parent=1 // pred_check_branch
      %224 = sbr.rel (0) target = $region25
    $region24: #{tpu_custom_call.1} parent=1 // pred_region
      %s226 = ssub.s32 32, 32
      %227 = vsyncadd [#allocation9], %s226
      %s229 = sshll.u32 [#allocation8], 4
      %s230 = int_to_ptr.vmem [resolvable:$true] %s229
      %232 = dma.vmem_to_hbm [thread:$0]  %s230, 32, %s2, [#allocation9]
    $region25: #{tpu_custom_call.1} parent=1 // pred_fallthru
      _
    // Predicated region
    $region26: #{tpu_custom_call.1} parent=1 // pred_check
      _
    $region27: #{tpu_custom_call.1} parent=1 // pred_check_branch
      %234 = sbr.rel (0) target = $region29
    $region28: #{tpu_custom_call.1} parent=1 // pred_region
      %s236 = ssub.s32 32, 32
      %237 = vsyncadd [#allocation9], %s236
      %s239 = sshll.u32 [#allocation10], 4
      %s240 = int_to_ptr.vmem [resolvable:$true] %s239
      %242 = dma.vmem_to_hbm [thread:$0]  %s240, 32, %s3, [#allocation9]
    $region29: #{tpu_custom_call.1} parent=1 // pred_fallthru
      _
    // Predicated region
    $region30: #{tpu_custom_call.1} parent=1 // pred_check
      _
    $region31: #{tpu_custom_call.1} parent=1 // pred_check_branch
      %244 = sbr.rel (0) target = $region33
    $region32: #{tpu_custom_call.1} parent=1 // pred_region
      %s246 = ssub.s32 32, 32
      %247 = vsyncadd [#allocation12], %s246
      %s249 = sshll.u32 [#allocation11], 4
      %s250 = int_to_ptr.vmem [resolvable:$true] %s249
      %252 = dma.vmem_to_hbm [thread:$0]  %s250, 32, %s4, [#allocation12]
    $region33: #{tpu_custom_call.1} parent=1 // pred_fallthru
      _
    // Predicated region
    $region34: #{tpu_custom_call.1} parent=1 // pred_check
      _
    $region35: #{tpu_custom_call.1} parent=1 // pred_check_branch
      %254 = sbr.rel (0) target = $region37
    $region36: #{tpu_custom_call.1} parent=1 // pred_region
      %s256 = ssub.s32 32, 32
      %257 = vsyncadd [#allocation12], %s256
      %s259 = sshll.u32 [#allocation13], 4
      %s260 = int_to_ptr.vmem [resolvable:$true] %s259
      %262 = dma.vmem_to_hbm [thread:$0]  %s260, 32, %s5, [#allocation12]
    $region37: #{tpu_custom_call.1} parent=1 // pred_fallthru
      _
    // Predicated region
    $region38: #{tpu_custom_call.1} parent=1 // pred_check
      _
    $region39: #{tpu_custom_call.1} parent=1 // pred_check_branch
      %264 = sbr.rel (0) target = $region41
    $region40: #{tpu_custom_call.1} parent=1 // pred_region
      %265 = dma.done [#allocation6], 32
    $region41: #{tpu_custom_call.1} parent=1 // pred_fallthru
      _
    // Predicated region
    $region42: #{tpu_custom_call.1} parent=1 // pred_check
      _
    $region43: #{tpu_custom_call.1} parent=1 // pred_check_branch
      %267 = sbr.rel (0) target = $region45
    $region44: #{tpu_custom_call.1} parent=1 // pred_region
      %268 = dma.done [#allocation9], 32
    $region45: #{tpu_custom_call.1} parent=1 // pred_fallthru
      _
    // Predicated region
    $region46: #{tpu_custom_call.1} parent=1 // pred_check
      _
    $region47: #{tpu_custom_call.1} parent=1 // pred_check_branch
      %270 = sbr.rel (0) target = $region49
    $region48: #{tpu_custom_call.1} parent=1 // pred_region
      %271 = dma.done [#allocation9], 32
    $region49: #{tpu_custom_call.1} parent=1 // pred_fallthru
      _
    // Predicated region
    $region50: #{tpu_custom_call.1} parent=1 // pred_check
      _
    $region51: #{tpu_custom_call.1} parent=1 // pred_check_branch
      %273 = sbr.rel (0) target = $region53
    $region52: #{tpu_custom_call.1} parent=1 // pred_region
      %274 = dma.done [#allocation12], 32
    $region53: #{tpu_custom_call.1} parent=1 // pred_fallthru
      _
    // Predicated region
    $region54: #{tpu_custom_call.1} parent=1 // pred_check
      _
    $region55: #{tpu_custom_call.1} parent=1 // pred_check_branch
      %276 = sbr.rel (0) target = $region57
    $region56: #{tpu_custom_call.1} parent=1 // pred_region
      %277 = dma.done [#allocation12], 32
    $region57: #{tpu_custom_call.1} parent=1 // pred_fallthru
      _
    %278 = vsyncpa [#allocation5], 1
    %279 = vsyncpa [#allocation6], 1
    %280 = vsyncpa [#allocation9], 1
    %281 = vsyncpa [#allocation12], 1

</llo_original>
